<compile_context>
chip_gen: v7x
topology: tpu7x:2x2x1
jax: 0.10.0
libtpu: 0.0.40
codegen_flags: <defaults>
</compile_context>

<pallas_src>
import numpy as np
import jax
import jax.numpy as jnp
from jax.experimental import pallas as pl
from jax.experimental.pallas import tpu as pltpu

# ----------------------------------------------------------------------------
# Config (mirrors the TransformerConfig fields used by the PyTorch module)
# ----------------------------------------------------------------------------
HEAD_DIM = 8
N_HEADS = 2
N_KV_HEADS = 1
TWO_D = 2 * HEAD_DIM                         # 16
D_MODEL = N_HEADS * TWO_D                    # 32 (module asserts n_heads*2*head_dim == d_model)
KV_GROUPS = N_HEADS // N_KV_HEADS
LAYER_IDX = 1
LAMBDA_INIT = 0.8 - 0.6 * float(np.exp(-0.3 * LAYER_IDX))
LN_EPS = 1e-5
SCALE = HEAD_DIM ** -0.5

# Fused QKV-weight column layout (access order inside the kernel):
#   [ q1 (all heads) | q2 (all heads) | k1 | k2 | v | v*lambda ]
Q1_OFF = 0
Q2_OFF = N_HEADS * HEAD_DIM                  # 16
K1_OFF = 2 * N_HEADS * HEAD_DIM              # 32
K2_OFF = K1_OFF + HEAD_DIM                   # 40
V_OFF = K2_OFF + HEAD_DIM                    # 48
VL_OFF = V_OFF + TWO_D                       # 64
QKV_COLS = VL_OFF + TWO_D                    # 80


# ----------------------------------------------------------------------------
# Fused Pallas kernel: ONE invocation, whole batch + both heads, all in VMEM
# ----------------------------------------------------------------------------
def _fused_diff_attn_kernel(x_ref, wqkv_ref, wob_ref, mask_ref, o_ref):
    bs = x_ref.shape[0]                                   # B*S (static)

    # --- QKV projection: one bf16 MXU matmul for the whole batch -------------
    x = x_ref[...].astype(jnp.bfloat16)                   # [BS, D_MODEL]
    wqkv = wqkv_ref[...].astype(jnp.bfloat16)             # [D_MODEL, QKV_COLS]
    qkv = jnp.dot(x, wqkv, preferred_element_type=jnp.float32)   # [BS, 80] f32

    # --- stack heads along sublanes: row = h*BS + (b*S + s) ------------------
    # (kv is shared across heads: GQA with a single kv head -> no repeat)
    q1 = jnp.concatenate(
        [qkv[:, Q1_OFF + h * HEAD_DIM:Q1_OFF + (h + 1) * HEAD_DIM] for h in range(N_HEADS)],
        axis=0)                                           # [H*BS, HEAD_DIM], scale pre-folded
    q2 = jnp.concatenate(
        [qkv[:, Q2_OFF + h * HEAD_DIM:Q2_OFF + (h + 1) * HEAD_DIM] for h in range(N_HEADS)],
        axis=0)                                           # [H*BS, HEAD_DIM]
    k1 = qkv[:, K1_OFF:K1_OFF + HEAD_DIM]                 # [BS, HEAD_DIM]
    k2 = qkv[:, K2_OFF:K2_OFF + HEAD_DIM]                 # [BS, HEAD_DIM]
    v = qkv[:, V_OFF:V_OFF + TWO_D]                       # [BS, 2*head_dim]
    vl = qkv[:, VL_OFF:VL_OFF + TWO_D]                    # [BS, 2*head_dim], lambda pre-folded

    # Additive mask, head-stacked and block-diagonal over batch (cross-batch = -1e9),
    # so one softmax over B*S key columns is exact per (head, batch, query) row.
    mask = mask_ref[...]                                  # [H*BS, BS] f32

    def attend(q, k, vv):
        # q @ k^T via contraction of last dims (no explicit transpose through the XLU)
        s = jax.lax.dot_general(q.astype(jnp.bfloat16), k.astype(jnp.bfloat16),
                                (((1,), (1,)), ((), ())),
                                preferred_element_type=jnp.float32)      # [H*BS, BS]
        s = s + mask
        s = s - jnp.max(s, axis=-1, keepdims=True)
        p = jnp.exp(s)
        p = p * pl.reciprocal(jnp.sum(p, axis=-1, keepdims=True), approx=True)
        return jnp.dot(p.astype(jnp.bfloat16), vv.astype(jnp.bfloat16),
                       preferred_element_type=jnp.float32)               # [H*BS, 2*head_dim]

    # A1 - lambda*A2  (lambda already folded into vl's generating weight columns)
    oh = attend(q1, k1, v) - attend(q2, k2, vl)           # [H*BS, 2*head_dim] f32

    # --- per-head LayerNorm over the last dim (f32 statistics) ---------------
    mean = jnp.mean(oh, axis=-1, keepdims=True)
    c = oh - mean
    var = jnp.mean(c * c, axis=-1, keepdims=True)
    normed = (c * jax.lax.rsqrt(var + LN_EPS)).astype(jnp.bfloat16)

    # --- output projection: gamma*(1-lambda_init) folded into W_O rows,
    #     beta*(1-lambda_init)@W_O is the appended bias row of wob --------------
    wob = wob_ref[...]                                    # [H*2hd + 1, D_MODEL] f32
    out = None
    for h in range(N_HEADS):                              # tiny static loop (2 matmuls)
        t = jnp.dot(normed[h * bs:(h + 1) * bs, :],
                    wob[h * TWO_D:(h + 1) * TWO_D, :].astype(jnp.bfloat16),
                    preferred_element_type=jnp.float32)   # [BS, D_MODEL]
        out = t if out is None else out + t
    out = out + wob[N_HEADS * TWO_D:N_HEADS * TWO_D + 1, :]   # folded LN-beta bias row

    o_ref[...] = out.astype(o_ref.dtype)                  # [BS, D_MODEL]


def diff_attention_forward(x, params, mask):
    """x: [B, S, D_MODEL]; mask: [1, 1, S, S] additive float mask. Returns [B, S, D_MODEL]."""
    B, S, _ = x.shape

    # --- host-side parameter algebra (folds/fuses under jit; nothing enters the kernel) ---
    w_q, w_kv, w_o = params["w_q"], params["w_kv"], params["w_o"]
    lam = (jnp.exp(params["lambda_q1"] * params["lambda_k1"])
           - jnp.exp(params["lambda_q2"] * params["lambda_k2"]) + LAMBDA_INIT)    # [2*head_dim]

    # reorder q columns to [q1 all heads | q2 all heads] and fold 1/sqrt(head_dim)
    w_q1 = jnp.concatenate([w_q[:, h * TWO_D:h * TWO_D + HEAD_DIM] for h in range(N_HEADS)], axis=1)
    w_q2 = jnp.concatenate([w_q[:, h * TWO_D + HEAD_DIM:(h + 1) * TWO_D] for h in range(N_HEADS)], axis=1)
    w_k, w_v = w_kv[:, :TWO_D], w_kv[:, TWO_D:]
    w_qkv = jnp.concatenate(
        [w_q1 * SCALE, w_q2 * SCALE,
         w_k[:, :HEAD_DIM], w_k[:, HEAD_DIM:],
         w_v, w_v * lam[None, :]], axis=1)                 # [D_MODEL, QKV_COLS]

    # fold per-head LayerNorm affine * (1 - lambda_init) into W_O (+ one bias row)
    post = 1.0 - LAMBDA_INIT
    gamma = (params["ln_gamma"] * post).reshape(-1)        # [D_MODEL], row-ordered like W_O
    beta = (params["ln_beta"] * post).reshape(1, -1)       # [1, D_MODEL]
    w_ob = jnp.concatenate([w_o * gamma[:, None], beta @ w_o], axis=0)   # [D_MODEL+1, D_MODEL]

    # head-stacked, batch-block-diagonal additive mask [H*B*S, B*S]
    mask2d = mask[0, 0]                                    # no kv_cache -> start=0, k_len=S
    bid = jnp.arange(B * S, dtype=jnp.int32) // S
    bmask = jnp.where(bid[:, None] == bid[None, :],
                      jnp.tile(mask2d, (B, B)), jnp.float32(-1e9))        # [B*S, B*S]
    big_mask = jnp.tile(bmask, (N_HEADS, 1))               # [H*B*S, B*S]

    x_flat = x.reshape(B * S, D_MODEL)

    out_flat = pl.pallas_call(
        _fused_diff_attn_kernel,
        out_shape=jax.ShapeDtypeStruct((B * S, D_MODEL), jnp.float32),
        in_specs=[pl.BlockSpec(memory_space=pltpu.MemorySpace.VMEM) for _ in range(4)],
        out_specs=pl.BlockSpec(memory_space=pltpu.MemorySpace.VMEM),
    )(x_flat, w_qkv, w_ob, big_mask)

    return out_flat.reshape(B, S, D_MODEL)


# ----------------------------------------------------------------------------
# Pure-JAX reference (mirrors the PyTorch flash-attention path, eval mode)
# ----------------------------------------------------------------------------
def reference_forward(x, params, mask):
    B, S, _ = x.shape
    q = (x @ params["w_q"]).reshape(B, S, N_HEADS, TWO_D).transpose(0, 2, 1, 3)
    kv = (x @ params["w_kv"]).reshape(B, S, 2, N_KV_HEADS, TWO_D)
    k = jnp.repeat(kv[:, :, 0].transpose(0, 2, 1, 3), KV_GROUPS, axis=1)
    v = jnp.repeat(kv[:, :, 1].transpose(0, 2, 1, 3), KV_GROUPS, axis=1)
    q1, q2 = q[..., :HEAD_DIM], q[..., HEAD_DIM:]
    k1, k2 = k[..., :HEAD_DIM], k[..., HEAD_DIM:]

    def sdpa(qq, kk):
        s = jnp.einsum("bhqd,bhkd->bhqk", qq, kk) * SCALE + mask
        p = jax.nn.softmax(s, axis=-1)
        return jnp.einsum("bhqk,bhkd->bhqd", p, v)

    lam = (jnp.exp(params["lambda_q1"] * params["lambda_k1"])
           - jnp.exp(params["lambda_q2"] * params["lambda_k2"]) + LAMBDA_INIT)
    out = sdpa(q1, k1) - lam * sdpa(q2, k2)
    mean = out.mean(-1, keepdims=True)
    var = ((out - mean) ** 2).mean(-1, keepdims=True)
    out = (out - mean) * jax.lax.rsqrt(var + LN_EPS)
    out = out * params["ln_gamma"][None, :, None, :] + params["ln_beta"][None, :, None, :]
    out = out * (1.0 - LAMBDA_INIT)
    out = out.transpose(0, 2, 1, 3).reshape(B, S, D_MODEL)
    return out @ params["w_o"]


# ----------------------------------------------------------------------------
# Main
# ----------------------------------------------------------------------------
if __name__ == "__main__":
    B, S = 2, 8
    key = jax.random.PRNGKey(0)
    ks = jax.random.split(key, 10)

    params = {
        # weights stored [in, out] (transposed vs torch Linear); attention_bias=False
        "w_q": 0.02 * jax.random.normal(ks[0], (D_MODEL, N_HEADS * TWO_D), jnp.float32),
        "w_kv": 0.02 * jax.random.normal(ks[1], (D_MODEL, 2 * N_KV_HEADS * TWO_D), jnp.float32),
        "w_o": 0.02 * jax.random.normal(ks[2], (D_MODEL, D_MODEL), jnp.float32),
        "lambda_q1": 1.0 + 0.1 * jax.random.normal(ks[3], (TWO_D,), jnp.float32),
        "lambda_k1": 1.0 + 0.1 * jax.random.normal(ks[4], (TWO_D,), jnp.float32),
        "lambda_q2": 1.0 + 0.1 * jax.random.normal(ks[5], (TWO_D,), jnp.float32),
        "lambda_k2": 1.0 + 0.1 * jax.random.normal(ks[6], (TWO_D,), jnp.float32),
        # per-head LayerNorm params (n_heads copies of dim 2*head_dim)
        "ln_gamma": 1.0 + 0.05 * jax.random.normal(ks[7], (N_HEADS, TWO_D), jnp.float32),
        "ln_beta": 0.05 * jax.random.normal(ks[8], (N_HEADS, TWO_D), jnp.float32),
    }

    x = jax.random.normal(ks[9], (B, S, D_MODEL), jnp.float32)
    # causal additive float mask, shape [1, 1, seq, seq]
    causal = jnp.tril(jnp.ones((S, S), dtype=bool))
    mask = jnp.where(causal, 0.0, -1e9).astype(jnp.float32)[None, None]

    fwd = jax.jit(diff_attention_forward)
    out = jax.block_until_ready(fwd(x, params, mask))
    ref = jax.block_until_ready(reference_forward(x, params, mask))

    assert out.shape == (B, S, D_MODEL)
    assert jnp.allclose(out, ref, atol=2e-2, rtol=2e-2), (
        f"max abs diff {float(jnp.max(jnp.abs(out - ref)))}")
    print("KERNEL_OK")
</pallas_src>

<mosaic_0001>
module attributes {stable_mosaic.version = 11 : i64} {
  func.func @_fused_diff_attn_kernel(%arg0: memref<16x32xf32, #tpu.memory_space<vmem>>, %arg1: memref<32x80xf32, #tpu.memory_space<vmem>>, %arg2: memref<33x32xf32, #tpu.memory_space<vmem>>, %arg3: memref<32x16xf32, #tpu.memory_space<vmem>>, %arg4: memref<16x32xf32, #tpu.memory_space<vmem>>) attributes {dimension_semantics = [], scalar_prefetch = 0 : i64, scratch_operands = 0 : i64, tpu.core_type = #tpu.core_type<tc>} {
    %c0 = arith.constant 0 : index
    %c0_0 = arith.constant 0 : index
    %0 = vector.load %arg0[%c0, %c0_0] : memref<16x32xf32, #tpu.memory_space<vmem>>, vector<16x32xf32>
    %1 = arith.truncf %0 : vector<16x32xf32> to vector<16x32xbf16>
    %c0_1 = arith.constant 0 : index
    %c0_2 = arith.constant 0 : index
    %2 = vector.load %arg1[%c0_1, %c0_2] : memref<32x80xf32, #tpu.memory_space<vmem>>, vector<32x80xf32>
    %3 = arith.truncf %2 : vector<32x80xf32> to vector<32x80xbf16>
    %cst = arith.constant dense<0.000000e+00> : vector<16x80xf32>
    %4 = tpu.matmul %1, %3, %cst {dimension_numbers = #tpu.dot_dimension_numbers<[1], [0], [0], [1], [0, 0, 1, 1], [], []>} : vector<16x32xbf16>, vector<32x80xbf16>, vector<16x80xf32> -> vector<16x80xf32>
    %5 = vector.extract_strided_slice %4 {offsets = [0, 0], sizes = [16, 8], strides = [1, 1]} : vector<16x80xf32> to vector<16x8xf32>
    %6 = vector.extract_strided_slice %4 {offsets = [0, 8], sizes = [16, 8], strides = [1, 1]} : vector<16x80xf32> to vector<16x8xf32>
    %7 = tpu.concatenate %5, %6 in 0 : vector<16x8xf32>, vector<16x8xf32> -> vector<32x8xf32>
    %8 = vector.extract_strided_slice %4 {offsets = [0, 16], sizes = [16, 8], strides = [1, 1]} : vector<16x80xf32> to vector<16x8xf32>
    %9 = vector.extract_strided_slice %4 {offsets = [0, 24], sizes = [16, 8], strides = [1, 1]} : vector<16x80xf32> to vector<16x8xf32>
    %10 = tpu.concatenate %8, %9 in 0 : vector<16x8xf32>, vector<16x8xf32> -> vector<32x8xf32>
    %11 = vector.extract_strided_slice %4 {offsets = [0, 32], sizes = [16, 8], strides = [1, 1]} : vector<16x80xf32> to vector<16x8xf32>
    %12 = vector.extract_strided_slice %4 {offsets = [0, 40], sizes = [16, 8], strides = [1, 1]} : vector<16x80xf32> to vector<16x8xf32>
    %13 = vector.extract_strided_slice %4 {offsets = [0, 48], sizes = [16, 16], strides = [1, 1]} : vector<16x80xf32> to vector<16x16xf32>
    %14 = vector.extract_strided_slice %4 {offsets = [0, 64], sizes = [16, 16], strides = [1, 1]} : vector<16x80xf32> to vector<16x16xf32>
    %c0_3 = arith.constant 0 : index
    %c0_4 = arith.constant 0 : index
    %15 = vector.load %arg3[%c0_3, %c0_4] : memref<32x16xf32, #tpu.memory_space<vmem>>, vector<32x16xf32>
    %16 = arith.truncf %7 : vector<32x8xf32> to vector<32x8xbf16>
    %17 = arith.truncf %11 : vector<16x8xf32> to vector<16x8xbf16>
    %cst_5 = arith.constant dense<0.000000e+00> : vector<32x16xf32>
    %18 = tpu.matmul %16, %17, %cst_5 {dimension_numbers = #tpu.dot_dimension_numbers<[1], [1], [0], [0], [0, 0, 1, 0], [], []>} : vector<32x8xbf16>, vector<16x8xbf16>, vector<32x16xf32> -> vector<32x16xf32>
    %19 = arith.addf %18, %15 : vector<32x16xf32>
    %cst_6 = arith.constant dense<0xFF800000> : vector<32xf32>
    %20 = vector.multi_reduction <maximumf>, %19, %cst_6 [1] : vector<32x16xf32> to vector<32xf32>
    %21 = vector.shape_cast %20 : vector<32xf32> to vector<32x1xf32>
    %22 = vector.broadcast %21 : vector<32x1xf32> to vector<32x16xf32>
    %23 = arith.subf %19, %22 : vector<32x16xf32>
    %24 = math.exp %23 : vector<32x16xf32>
    %cst_7 = arith.constant dense<0.000000e+00> : vector<32xf32>
    %25 = vector.multi_reduction <add>, %24, %cst_7 [1] : vector<32x16xf32> to vector<32xf32>
    %26 = vector.shape_cast %25 : vector<32xf32> to vector<32x1xf32>
    %27 = tpu.reciprocal %26 {approx = true} : vector<32x1xf32> -> vector<32x1xf32>
    %28 = vector.broadcast %27 : vector<32x1xf32> to vector<32x16xf32>
    %29 = arith.mulf %24, %28 : vector<32x16xf32>
    %30 = arith.truncf %29 : vector<32x16xf32> to vector<32x16xbf16>
    %31 = arith.truncf %13 : vector<16x16xf32> to vector<16x16xbf16>
    %cst_8 = arith.constant dense<0.000000e+00> : vector<32x16xf32>
    %32 = tpu.matmul %30, %31, %cst_8 {dimension_numbers = #tpu.dot_dimension_numbers<[1], [0], [0], [1], [0, 0, 1, 1], [], []>} : vector<32x16xbf16>, vector<16x16xbf16>, vector<32x16xf32> -> vector<32x16xf32>
    %33 = arith.truncf %10 : vector<32x8xf32> to vector<32x8xbf16>
    %34 = arith.truncf %12 : vector<16x8xf32> to vector<16x8xbf16>
    %cst_9 = arith.constant dense<0.000000e+00> : vector<32x16xf32>
    %35 = tpu.matmul %33, %34, %cst_9 {dimension_numbers = #tpu.dot_dimension_numbers<[1], [1], [0], [0], [0, 0, 1, 0], [], []>} : vector<32x8xbf16>, vector<16x8xbf16>, vector<32x16xf32> -> vector<32x16xf32>
    %36 = arith.addf %35, %15 : vector<32x16xf32>
    %cst_10 = arith.constant dense<0xFF800000> : vector<32xf32>
    %37 = vector.multi_reduction <maximumf>, %36, %cst_10 [1] : vector<32x16xf32> to vector<32xf32>
    %38 = vector.shape_cast %37 : vector<32xf32> to vector<32x1xf32>
    %39 = vector.broadcast %38 : vector<32x1xf32> to vector<32x16xf32>
    %40 = arith.subf %36, %39 : vector<32x16xf32>
    %41 = math.exp %40 : vector<32x16xf32>
    %cst_11 = arith.constant dense<0.000000e+00> : vector<32xf32>
    %42 = vector.multi_reduction <add>, %41, %cst_11 [1] : vector<32x16xf32> to vector<32xf32>
    %43 = vector.shape_cast %42 : vector<32xf32> to vector<32x1xf32>
    %44 = tpu.reciprocal %43 {approx = true} : vector<32x1xf32> -> vector<32x1xf32>
    %45 = vector.broadcast %44 : vector<32x1xf32> to vector<32x16xf32>
    %46 = arith.mulf %41, %45 : vector<32x16xf32>
    %47 = arith.truncf %46 : vector<32x16xf32> to vector<32x16xbf16>
    %48 = arith.truncf %14 : vector<16x16xf32> to vector<16x16xbf16>
    %cst_12 = arith.constant dense<0.000000e+00> : vector<32x16xf32>
    %49 = tpu.matmul %47, %48, %cst_12 {dimension_numbers = #tpu.dot_dimension_numbers<[1], [0], [0], [1], [0, 0, 1, 1], [], []>} : vector<32x16xbf16>, vector<16x16xbf16>, vector<32x16xf32> -> vector<32x16xf32>
    %50 = arith.subf %32, %49 : vector<32x16xf32>
    %cst_13 = arith.constant dense<0.000000e+00> : vector<32xf32>
    %51 = vector.multi_reduction <add>, %50, %cst_13 [1] : vector<32x16xf32> to vector<32xf32>
    %52 = vector.shape_cast %51 : vector<32xf32> to vector<32x1xf32>
    %cst_14 = arith.constant 1.600000e+01 : f32
    %53 = vector.broadcast %cst_14 : f32 to vector<32x1xf32>
    %54 = arith.divf %52, %53 : vector<32x1xf32>
    %55 = vector.broadcast %54 : vector<32x1xf32> to vector<32x16xf32>
    %56 = arith.subf %50, %55 : vector<32x16xf32>
    %57 = arith.mulf %56, %56 : vector<32x16xf32>
    %cst_15 = arith.constant dense<0.000000e+00> : vector<32xf32>
    %58 = vector.multi_reduction <add>, %57, %cst_15 [1] : vector<32x16xf32> to vector<32xf32>
    %59 = vector.shape_cast %58 : vector<32xf32> to vector<32x1xf32>
    %cst_16 = arith.constant 1.600000e+01 : f32
    %60 = vector.broadcast %cst_16 : f32 to vector<32x1xf32>
    %61 = arith.divf %59, %60 : vector<32x1xf32>
    %cst_17 = arith.constant 9.99999974E-6 : f32
    %62 = vector.broadcast %cst_17 : f32 to vector<32x1xf32>
    %63 = arith.addf %61, %62 : vector<32x1xf32>
    %64 = math.rsqrt %63 : vector<32x1xf32>
    %65 = vector.broadcast %64 : vector<32x1xf32> to vector<32x16xf32>
    %66 = arith.mulf %56, %65 : vector<32x16xf32>
    %67 = arith.truncf %66 : vector<32x16xf32> to vector<32x16xbf16>
    %c0_18 = arith.constant 0 : index
    %c0_19 = arith.constant 0 : index
    %68 = vector.load %arg2[%c0_18, %c0_19] : memref<33x32xf32, #tpu.memory_space<vmem>>, vector<33x32xf32>
    %69 = vector.extract_strided_slice %67 {offsets = [0, 0], sizes = [16, 16], strides = [1, 1]} : vector<32x16xbf16> to vector<16x16xbf16>
    %70 = vector.extract_strided_slice %68 {offsets = [0, 0], sizes = [16, 32], strides = [1, 1]} : vector<33x32xf32> to vector<16x32xf32>
    %71 = arith.truncf %70 : vector<16x32xf32> to vector<16x32xbf16>
    %cst_20 = arith.constant dense<0.000000e+00> : vector<16x32xf32>
    %72 = tpu.matmul %69, %71, %cst_20 {dimension_numbers = #tpu.dot_dimension_numbers<[1], [0], [0], [1], [0, 0, 1, 1], [], []>} : vector<16x16xbf16>, vector<16x32xbf16>, vector<16x32xf32> -> vector<16x32xf32>
    %73 = vector.extract_strided_slice %67 {offsets = [16, 0], sizes = [16, 16], strides = [1, 1]} : vector<32x16xbf16> to vector<16x16xbf16>
    %74 = vector.extract_strided_slice %68 {offsets = [16, 0], sizes = [16, 32], strides = [1, 1]} : vector<33x32xf32> to vector<16x32xf32>
    %75 = arith.truncf %74 : vector<16x32xf32> to vector<16x32xbf16>
    %cst_21 = arith.constant dense<0.000000e+00> : vector<16x32xf32>
    %76 = tpu.matmul %73, %75, %cst_21 {dimension_numbers = #tpu.dot_dimension_numbers<[1], [0], [0], [1], [0, 0, 1, 1], [], []>} : vector<16x16xbf16>, vector<16x32xbf16>, vector<16x32xf32> -> vector<16x32xf32>
    %77 = arith.addf %72, %76 : vector<16x32xf32>
    %78 = vector.extract_strided_slice %68 {offsets = [32, 0], sizes = [1, 32], strides = [1, 1]} : vector<33x32xf32> to vector<1x32xf32>
    %79 = vector.broadcast %78 : vector<1x32xf32> to vector<16x32xf32>
    %80 = arith.addf %77, %79 : vector<16x32xf32>
    %c0_22 = arith.constant 0 : index
    %c0_23 = arith.constant 0 : index
    %81 = vector.load %arg4[%c0_22, %c0_23] : memref<16x32xf32, #tpu.memory_space<vmem>>, vector<16x32xf32>
    tpu.vector_store %arg4[%c0_22, %c0_23], %80 {strides = array<i32>} : memref<16x32xf32, #tpu.memory_space<vmem>>, vector<16x32xf32>,
    return
  }
}

</mosaic_0001>

<llo_original>
// kernel: mul.25
$region0: #{mul.25}
  %s0 = inlined_call_operand.vmem [shape: f32[2,16], index: 0, kind: input, shape index: {}]
  %s1 = inlined_call_operand.vmem [shape: f32[32], index: 1, kind: output, shape index: {}]
  $region1: #{mul.25} parent=0
    #allocation0 [shape = 'u8[4096]{0}', space=vmem, size = 0x1000, scoped, tag = 'scoped mem for output reshape']
    #allocation1 [shape = 'u8[4096]{0}', space=vmem, size = 0x1000, scoped, tag = 'scoped mem for input reshape']
    %s3 = sshllo.u32 0, 2
    %v4 = vld [vmem:[%s0] sm:%s3]
    %5 = vst [vmem:[#allocation1] sm:%s3] %v4
    %v6 = vld [vmem:[#allocation1] sm:$0x1]
    %vm7 = vcmask 130048
    %8 = vst.msk [vmem:[#allocation0] sm:$0x1] %vm7, %v6
    %s9 = scalar_lea.vmem [#allocation1], 1
    %v10 = vld [vmem:[%s9] sm:$0x1]
    %11 = vrot.lane.b32.xlu0 %v10, 16
    %v12 = vpop.permute.xlu0 %11
    %vm13 = vcmask 261248
    %14 = vst.msk [vmem:[#allocation0] sm:$0x1] %vm13, %v12
    %s16 = sshllo.u32 0, 1
    %v18 = vld [vmem:[#allocation0] sm:%s16]
    %s19 = sshllo.u32 0, 1
    %20 = vst [vmem:[%s1] sm:%s19] %v18

// kernel: tile.11
$region0: #{tile.11}
  #allocation0 [shape = 's32[1]{0}', space=sflag, size = 0x4, scoped, tag = 'scoped memory for tile.11']
  %s0 = inlined_call_operand.vmem [shape: f32[8,8], index: 0, kind: input, shape index: {}]
  %s1 = inlined_call_operand.vmem [shape: f32[2,8,2,8], index: 1, kind: output, shape index: {}]
  // Predicated region
  $region2: #{tile.11} parent=0 // pred_check
    _
  $region3: #{tile.11} parent=0 // pred_check_branch
    %3 = sbr.rel (0) target = $region5
  $region4: #{tile.11} parent=0 // pred_region
    _
  $region5: #{tile.11} parent=0 // pred_fallthru
    _
  %v4 = vld [vmem:[%s0] ss:$0 sm:$0xff]
  %5 = vst [vmem:[%s1] sm:$0x3] %v4
  %s6 = scalar_lea.vmem %s1, 16
  %7 = vst [vmem:[%s6] sm:$0x3] %v4
  %s8 = scalar_lea.vmem %s0, 1
  %v9 = vld [vmem:[%s8] ss:$0 sm:$0xff]
  %s10 = scalar_lea.vmem %s1, 2
  %11 = vst [vmem:[%s10] sm:$0x3] %v9
  %s12 = scalar_lea.vmem %s1, 18
  %13 = vst [vmem:[%s12] sm:$0x3] %v9
  %s14 = scalar_lea.vmem %s0, 2
  %v15 = vld [vmem:[%s14] ss:$0 sm:$0xff]
  %s16 = scalar_lea.vmem %s1, 4
  %17 = vst [vmem:[%s16] sm:$0x3] %v15
  %s18 = scalar_lea.vmem %s1, 20
  %19 = vst [vmem:[%s18] sm:$0x3] %v15
  %s20 = scalar_lea.vmem %s0, 3
  %v21 = vld [vmem:[%s20] ss:$0 sm:$0xff]
  %s22 = scalar_lea.vmem %s1, 6
  %23 = vst [vmem:[%s22] sm:$0x3] %v21
  %s24 = scalar_lea.vmem %s1, 22
  %25 = vst [vmem:[%s24] sm:$0x3] %v21
  %s26 = scalar_lea.vmem %s0, 4
  %v27 = vld [vmem:[%s26] ss:$0 sm:$0xff]
  %s28 = scalar_lea.vmem %s1, 8
  %29 = vst [vmem:[%s28] sm:$0x3] %v27
  %s30 = scalar_lea.vmem %s1, 24
  %31 = vst [vmem:[%s30] sm:$0x3] %v27
  %s32 = scalar_lea.vmem %s0, 5
  %v33 = vld [vmem:[%s32] ss:$0 sm:$0xff]
  %s34 = scalar_lea.vmem %s1, 10
  %35 = vst [vmem:[%s34] sm:$0x3] %v33
  %s36 = scalar_lea.vmem %s1, 26
  %37 = vst [vmem:[%s36] sm:$0x3] %v33
  %s38 = scalar_lea.vmem %s0, 6
  %v39 = vld [vmem:[%s38] ss:$0 sm:$0xff]
  %s40 = scalar_lea.vmem %s1, 12
  %41 = vst [vmem:[%s40] sm:$0x3] %v39
  %s42 = scalar_lea.vmem %s1, 28
  %43 = vst [vmem:[%s42] sm:$0x3] %v39
  %s44 = scalar_lea.vmem %s0, 7
  %v45 = vld [vmem:[%s44] ss:$0 sm:$0xff]
  %s46 = scalar_lea.vmem %s1, 14
  %47 = vst [vmem:[%s46] sm:$0x3] %v45
  %s48 = scalar_lea.vmem %s1, 30
  %49 = vst [vmem:[%s48] sm:$0x3] %v45

// kernel: diff_attention_forward.1
$region0: #{diff_attention_forward.1}
  #allocation0 [shape = 'u32[]', space=smem, size = 0x4, offset = 0x4, fixed_abs, tag = 'smem constant byte address 0x4 - core index']
  #allocation1 [shape = 'u32[144,128]{1,0:T(1,128)}', space=vmem, size = 0x12000, scoped, tag = 'internal scratch']
  %s0 = inlined_call_operand.vmem [shape: f32[16,32], index: 0, kind: input, shape index: {}]
  %s1 = inlined_call_operand.vmem [shape: f32[32,80], index: 1, kind: input, shape index: {}]
  %s2 = inlined_call_operand.vmem [shape: f32[33,32], index: 2, kind: input, shape index: {}]
  %s3 = inlined_call_operand.vmem [shape: f32[32,16], index: 3, kind: input, shape index: {}]
  %s4 = inlined_call_operand.hbm [shape: f32[16,32], index: 4, kind: output, shape index: {}]
  %s5 = sld [smem:[#allocation0]]
  $region26: #{diff_attention_forward.1} parent=0
    _
  %s7 = ssub.s32 1, %s5
  %s8 = scalar_select 0, %s7, %s5
  $region1: #{diff_attention_forward.1} parent=0
    #allocation2 [shape = 'u8[8192]{0}', space=vmem, size = 0x2000, scoped, tag = 'output window, operand 0, single buffered']
    #allocation3 [shape = 's32[1]{0}', space=sflag, size = 0x4, scoped, tag = 'scoped memory for diff_attention_forward.1']
    %9 = vsyncpa [#allocation3], 0
    // Predicated region
    $region2: #{diff_attention_forward.1} parent=1 // pred_check
      _
    $region3: #{diff_attention_forward.1} parent=1 // pred_check_branch
      %11 = sbr.rel (0) target = $region5
    $region4: #{diff_attention_forward.1} parent=1 // pred_region
      _
    $region5: #{diff_attention_forward.1} parent=1 // pred_fallthru
      _
    // Predicated region
    $region6: #{diff_attention_forward.1} parent=1 // pred_check
      _
    $region7: #{diff_attention_forward.1} parent=1 // pred_check_branch
      %13 = sbr.rel (0) target = $region9
    $region8: #{diff_attention_forward.1} parent=1 // pred_region
      _
    $region9: #{diff_attention_forward.1} parent=1 // pred_fallthru
      _
    // Predicated region
    $region10: #{diff_attention_forward.1} parent=1 // pred_check
      _
    $region11: #{diff_attention_forward.1} parent=1 // pred_check_branch
      %15 = sbr.rel (0) target = $region13
    $region12: #{diff_attention_forward.1} parent=1 // pred_region
      _
    $region13: #{diff_attention_forward.1} parent=1 // pred_fallthru
      _
    // Predicated region
    $region14: #{diff_attention_forward.1} parent=1 // pred_check
      _
    $region15: #{diff_attention_forward.1} parent=1 // pred_check_branch
      %17 = sbr.rel (0) target = $region17
    $region16: #{diff_attention_forward.1} parent=1 // pred_region
      _
    $region17: #{diff_attention_forward.1} parent=1 // pred_fallthru
      _
    %v19 = vld [vmem:[%s0] sm:$0xff]
    %v20 = vld [vmem:[%s0 + $0x8] sm:$0xff]
    %v21 = vpack.c.bf16 %v20, %v19
    %v22 = vld [vmem:[%s1] sm:$0xff]
    %v23 = vld [vmem:[%s1 + $0x8] sm:$0xff]
    %v24 = vld [vmem:[%s1 + $0x10] sm:$0xff]
    %v25 = vld [vmem:[%s1 + $0x18] sm:$0xff]
    %v26 = vpack.c.bf16 %v23, %v22
    %v27 = vpack.c.bf16 %v25, %v24
    %vm28 = vcmask 261120
    %v30 = vsel %vm28, %v21, 0
    %32 = vmatprep.subr.bf16.mxu0 0
    %33 = vmatpush1.bf16.msra.mxu0 %v26
    %34 = vmatprep.subr.bf16.mxu0 0
    %35 = vmatpush1.bf16.msra.mxu0 %v27
    %36 = vmatprep.subr.bf16.mxu0 0
    %37 = vmatpush1.bf16.msra.mxu0 0
    %38 = vmatprep.subr.bf16.mxu0 0
    %39 = vmatpush1.bf16.msra.mxu0 0
    %40 = vmatprep.subr.bf16.mxu0 0
    %41 = vmatpush1.bf16.msra.mxu0 0
    %42 = vmatprep.subr.bf16.mxu0 0
    %43 = vmatpush1.bf16.msra.mxu0 0
    %44 = vmatprep.subr.bf16.mxu0 0
    %45 = vmatpush1.bf16.msra.mxu0 0
    %46 = vmatprep.subr.bf16.mxu0 0
    %47 = vmatpush1.bf16.msra.mxu0 0
    %48 = vmatprep.subr.bf16.mxu0 0
    %49 = vmatpush1.bf16.msra.mxu0 0
    %50 = vmatprep.subr.bf16.mxu0 0
    %51 = vmatpush1.bf16.msra.mxu0 0
    %52 = vmatprep.subr.bf16.mxu0 0
    %53 = vmatpush1.bf16.msra.mxu0 0
    %54 = vmatprep.subr.bf16.mxu0 0
    %55 = vmatpush1.bf16.msra.mxu0 0
    %56 = vmatprep.subr.bf16.mxu0 0
    %57 = vmatpush1.bf16.msra.mxu0 0
    %58 = vmatprep.subr.bf16.mxu0 0
    %59 = vmatpush1.bf16.msra.mxu0 0
    %60 = vmatprep.subr.bf16.mxu0 0
    %61 = vmatpush1.bf16.msra.mxu0 0
    %62 = vmatprep.subr.bf16.mxu0 0
    %63 = vmatpush1.bf16.msra.mxu0 0
    %64 = vmatprep.mubr.bf16.mxu0 0
    %65 = vmatmul.mubr.bf16.gmra.mrb[0].mxu0 %v30
    %v66 = vpop.f32.mrb[0].mxu0
    %v67 = vadd.f32 0.0, %v66
    %v68 = vpop.f32.mrb[0].mxu0
    %v69 = vpop.f32.mrb[0].mxu0
    %v70 = vadd.f32 0.0, %v69
    %v71 = vpop.f32.mrb[0].mxu0
    %72 = vdwg.mxu0
    %75 = vrot.lane.b32.xlu0 %v67, 120
    %v76 = vpop.permute.xlu0 %75
    %77 = vrot.lane.b32.xlu0 %v70, 120
    %v78 = vpop.permute.xlu0 %77
    %v81 = vld [vmem:[%s3] sm:$0xff]
    %v82 = vld [vmem:[%s3 + $0x8] sm:$0xff]
    %v83 = vld [vmem:[%s3 + $0x10] sm:$0xff]
    %v84 = vld [vmem:[%s3 + $0x18] sm:$0xff]
    %v85 = vpack.c.bf16 %v70, %v67
    %v86 = vpack.c.bf16 %v78, %v76
    %88 = vrot.lane.b32.xlu0 %v85, 96
    %v89 = vpop.permute.xlu0 %88
    %vm90 = vcmask 64512
    %v92 = vsel %vm90, %v85, 0
    %v95 = vsel %vm90, %v86, 0
    %v98 = vsel %vm90, %v89, 0
    %100 = vmatprep.subr.bf16.mxu0 0
    %101 = vmatpush1.bf16.xpose.msra.mxu0 %v98
    %102 = vmatprep.subr.bf16.mxu0 0
    %103 = vmatpush1.bf16.xpose.msra.mxu0 0
    %104 = vmatprep.subr.bf16.mxu0 0
    %105 = vmatpush1.bf16.xpose.msra.mxu0 0
    %106 = vmatprep.subr.bf16.mxu0 0
    %107 = vmatpush1.bf16.xpose.msra.mxu0 0
    %108 = vmatprep.subr.bf16.mxu0 0
    %109 = vmatpush1.bf16.xpose.msra.mxu0 0
    %110 = vmatprep.subr.bf16.mxu0 0
    %111 = vmatpush1.bf16.xpose.msra.mxu0 0
    %112 = vmatprep.subr.bf16.mxu0 0
    %113 = vmatpush1.bf16.xpose.msra.mxu0 0
    %114 = vmatprep.subr.bf16.mxu0 0
    %115 = vmatpush1.bf16.xpose.msra.mxu0 0
    %116 = vmatprep.subr.bf16.mxu0 0
    %117 = vmatpush1.bf16.xpose.msra.mxu0 0
    %118 = vmatprep.subr.bf16.mxu0 0
    %119 = vmatpush1.bf16.xpose.msra.mxu0 0
    %120 = vmatprep.subr.bf16.mxu0 0
    %121 = vmatpush1.bf16.xpose.msra.mxu0 0
    %122 = vmatprep.subr.bf16.mxu0 0
    %123 = vmatpush1.bf16.xpose.msra.mxu0 0
    %124 = vmatprep.subr.bf16.mxu0 0
    %125 = vmatpush1.bf16.xpose.msra.mxu0 0
    %126 = vmatprep.subr.bf16.mxu0 0
    %127 = vmatpush1.bf16.xpose.msra.mxu0 0
    %128 = vmatprep.subr.bf16.mxu0 0
    %129 = vmatpush1.bf16.xpose.msra.mxu0 0
    %130 = vmatprep.subr.bf16.mxu0 0
    %131 = vmatpush1.bf16.xpose.msra.mxu0 0
    %132 = vmatprep.mubr.bf16.mxu0 0
    %133 = vmatmul.mubr.bf16.gmra.mrb[0].mxu0 %v92
    %v134 = vpop.f32.mrb[0].mxu0
    %v135 = vadd.f32 %v81, %v134
    %v136 = vpop.f32.mrb[0].mxu0
    %v137 = vpop.f32.mrb[0].mxu0
    %v138 = vadd.f32 %v82, %v137
    %v139 = vpop.f32.mrb[0].mxu0
    %140 = vmatprep.mubr.bf16.mxu0 0
    %141 = vmatmul.mubr.bf16.gmra.mrb[0].mxu0 %v95
    %v142 = vpop.f32.mrb[0].mxu0
    %v143 = vadd.f32 %v83, %v142
    %v144 = vpop.f32.mrb[0].mxu0
    %v145 = vpop.f32.mrb[0].mxu0
    %v146 = vadd.f32 %v84, %v145
    %v147 = vpop.f32.mrb[0].mxu0
    %148 = vdwg.mxu0
    %vm149 = vcmask 130048
    %v150 = vsel %vm149, %v135, -inf
    %151 = vmax.xlane.f32.xlu0 %v150
    %v152 = vpop.xlane.xlu0 %151
    %v153 = vsel %vm149, %v138, -inf
    %154 = vmax.xlane.f32.xlu0 %v153
    %v155 = vpop.xlane.xlu0 %154
    %v156 = vsel %vm149, %v143, -inf
    %157 = vmax.xlane.f32.xlu0 %v156
    %v158 = vpop.xlane.xlu0 %157
    %v159 = vsel %vm149, %v146, -inf
    %160 = vmax.xlane.f32.xlu0 %v159
    %v161 = vpop.xlane.xlu0 %160
    %v162 = vsub.f32 %v135, %v152
    %v163 = vsub.f32 %v138, %v155
    %v164 = vsub.f32 %v143, %v158
    %v165 = vsub.f32 %v146, %v161
    %v166 = vmul.f32 %v162, 1.442695
    %v167 = vpow.pop %v166
    %v168 = vmul.f32 %v163, 1.442695
    %v169 = vpow.pop %v168
    %v170 = vmul.f32 %v164, 1.442695
    %v171 = vpow.pop %v170
    %v172 = vmul.f32 %v165, 1.442695
    %v173 = vpow.pop %v172
    %v174 = vsel %vm149, %v167, 0.0
    %175 = vadd.xlane.f32.xlu0 %v174
    %v176 = vpop.xlane.xlu0 %175
    %v177 = vsel %vm149, %v169, 0.0
    %178 = vadd.xlane.f32.xlu0 %v177
    %v179 = vpop.xlane.xlu0 %178
    %v180 = vsel %vm149, %v171, 0.0
    %181 = vadd.xlane.f32.xlu0 %v180
    %v182 = vpop.xlane.xlu0 %181
    %v183 = vsel %vm149, %v173, 0.0
    %184 = vadd.xlane.f32.xlu0 %v183
    %v185 = vpop.xlane.xlu0 %184
    %v186 = vrcp.pop %v176
    %v187 = vrcp.pop %v179
    %v188 = vrcp.pop %v182
    %v189 = vrcp.pop %v185
    %v190 = vmul.f32 %v167, %v186
    %v191 = vmul.f32 %v169, %v187
    %v192 = vmul.f32 %v171, %v188
    %v193 = vmul.f32 %v173, %v189
    %v194 = vpack.c.bf16 %v191, %v190
    %v195 = vpack.c.bf16 %v193, %v192
    %196 = vrot.lane.b32.xlu0 %v85, 80
    %v197 = vpop.permute.xlu0 %196
    %v200 = vsel %vm149, %v194, 0
    %v203 = vsel %vm149, %v195, 0
    %205 = vmatprep.subr.bf16.mxu0 0
    %206 = vmatpush1.bf16.msra.mxu0 %v197
    %207 = vmatprep.subr.bf16.mxu0 0
    %208 = vmatpush1.bf16.msra.mxu0 0
    %209 = vmatprep.subr.bf16.mxu0 0
    %210 = vmatpush1.bf16.msra.mxu0 0
    %211 = vmatprep.subr.bf16.mxu0 0
    %212 = vmatpush1.bf16.msra.mxu0 0
    %213 = vmatprep.subr.bf16.mxu0 0
    %214 = vmatpush1.bf16.msra.mxu0 0
    %215 = vmatprep.subr.bf16.mxu0 0
    %216 = vmatpush1.bf16.msra.mxu0 0
    %217 = vmatprep.subr.bf16.mxu0 0
    %218 = vmatpush1.bf16.msra.mxu0 0
    %219 = vmatprep.subr.bf16.mxu0 0
    %220 = vmatpush1.bf16.msra.mxu0 0
    %221 = vmatprep.subr.bf16.mxu0 0
    %222 = vmatpush1.bf16.msra.mxu0 0
    %223 = vmatprep.subr.bf16.mxu0 0
    %224 = vmatpush1.bf16.msra.mxu0 0
    %225 = vmatprep.subr.bf16.mxu0 0
    %226 = vmatpush1.bf16.msra.mxu0 0
    %227 = vmatprep.subr.bf16.mxu0 0
    %228 = vmatpush1.bf16.msra.mxu0 0
    %229 = vmatprep.subr.bf16.mxu0 0
    %230 = vmatpush1.bf16.msra.mxu0 0
    %231 = vmatprep.subr.bf16.mxu0 0
    %232 = vmatpush1.bf16.msra.mxu0 0
    %233 = vmatprep.subr.bf16.mxu0 0
    %234 = vmatpush1.bf16.msra.mxu0 0
    %235 = vmatprep.subr.bf16.mxu0 0
    %236 = vmatpush1.bf16.msra.mxu0 0
    %237 = vmatprep.mubr.bf16.mxu0 0
    %238 = vmatmul.mubr.bf16.gmra.mrb[0].mxu0 %v200
    %v239 = vpop.f32.mrb[0].mxu0
    %v240 = vadd.f32 0.0, %v239
    %v241 = vpop.f32.mrb[0].mxu0
    %v242 = vpop.f32.mrb[0].mxu0
    %v243 = vadd.f32 0.0, %v242
    %v244 = vpop.f32.mrb[0].mxu0
    %245 = vmatprep.mubr.bf16.mxu0 0
    %246 = vmatmul.mubr.bf16.gmra.mrb[0].mxu0 %v203
    %v247 = vpop.f32.mrb[0].mxu0
    %v248 = vadd.f32 0.0, %v247
    %v249 = vpop.f32.mrb[0].mxu0
    %v250 = vpop.f32.mrb[0].mxu0
    %v251 = vadd.f32 0.0, %v250
    %v252 = vpop.f32.mrb[0].mxu0
    %253 = vdwg.mxu0
    %255 = vrot.lane.b32.xlu0 %v85, 112
    %v256 = vpop.permute.xlu0 %255
    %257 = vrot.lane.b32.xlu0 %v86, 112
    %v258 = vpop.permute.xlu0 %257
    %259 = vrot.lane.b32.xlu0 %v85, 88
    %v260 = vpop.permute.xlu0 %259
    %v262 = vsel %vm90, %v256, 0
    %v265 = vsel %vm90, %v258, 0
    %v268 = vsel %vm90, %v260, 0
    %270 = vmatprep.subr.bf16.mxu0 0
    %271 = vmatpush1.bf16.xpose.msra.mxu0 %v268
    %272 = vmatprep.subr.bf16.mxu0 0
    %273 = vmatpush1.bf16.xpose.msra.mxu0 0
    %274 = vmatprep.subr.bf16.mxu0 0
    %275 = vmatpush1.bf16.xpose.msra.mxu0 0
    %276 = vmatprep.subr.bf16.mxu0 0
    %277 = vmatpush1.bf16.xpose.msra.mxu0 0
    %278 = vmatprep.subr.bf16.mxu0 0
    %279 = vmatpush1.bf16.xpose.msra.mxu0 0
    %280 = vmatprep.subr.bf16.mxu0 0
    %281 = vmatpush1.bf16.xpose.msra.mxu0 0
    %282 = vmatprep.subr.bf16.mxu0 0
    %283 = vmatpush1.bf16.xpose.msra.mxu0 0
    %284 = vmatprep.subr.bf16.mxu0 0
    %285 = vmatpush1.bf16.xpose.msra.mxu0 0
    %286 = vmatprep.subr.bf16.mxu0 0
    %287 = vmatpush1.bf16.xpose.msra.mxu0 0
    %288 = vmatprep.subr.bf16.mxu0 0
    %289 = vmatpush1.bf16.xpose.msra.mxu0 0
    %290 = vmatprep.subr.bf16.mxu0 0
    %291 = vmatpush1.bf16.xpose.msra.mxu0 0
    %292 = vmatprep.subr.bf16.mxu0 0
    %293 = vmatpush1.bf16.xpose.msra.mxu0 0
    %294 = vmatprep.subr.bf16.mxu0 0
    %295 = vmatpush1.bf16.xpose.msra.mxu0 0
    %296 = vmatprep.subr.bf16.mxu0 0
    %297 = vmatpush1.bf16.xpose.msra.mxu0 0
    %298 = vmatprep.subr.bf16.mxu0 0
    %299 = vmatpush1.bf16.xpose.msra.mxu0 0
    %300 = vmatprep.subr.bf16.mxu0 0
    %301 = vmatpush1.bf16.xpose.msra.mxu0 0
    %302 = vmatprep.mubr.bf16.mxu0 0
    %303 = vmatmul.mubr.bf16.gmra.mrb[0].mxu0 %v262
    %v304 = vpop.f32.mrb[0].mxu0
    %v305 = vadd.f32 %v81, %v304
    %v306 = vpop.f32.mrb[0].mxu0
    %v307 = vpop.f32.mrb[0].mxu0
    %v308 = vadd.f32 %v82, %v307
    %v309 = vpop.f32.mrb[0].mxu0
    %310 = vmatprep.mubr.bf16.mxu0 0
    %311 = vmatmul.mubr.bf16.gmra.mrb[0].mxu0 %v265
    %v312 = vpop.f32.mrb[0].mxu0
    %v313 = vadd.f32 %v83, %v312
    %v314 = vpop.f32.mrb[0].mxu0
    %v315 = vpop.f32.mrb[0].mxu0
    %v316 = vadd.f32 %v84, %v315
    %v317 = vpop.f32.mrb[0].mxu0
    %318 = vdwg.mxu0
    %v319 = vsel %vm149, %v305, -inf
    %320 = vmax.xlane.f32.xlu0 %v319
    %v321 = vpop.xlane.xlu0 %320
    %v322 = vsel %vm149, %v308, -inf
    %323 = vmax.xlane.f32.xlu0 %v322
    %v324 = vpop.xlane.xlu0 %323
    %v325 = vsel %vm149, %v313, -inf
    %326 = vmax.xlane.f32.xlu0 %v325
    %v327 = vpop.xlane.xlu0 %326
    %v328 = vsel %vm149, %v316, -inf
    %329 = vmax.xlane.f32.xlu0 %v328
    %v330 = vpop.xlane.xlu0 %329
    %v331 = vsub.f32 %v305, %v321
    %v332 = vsub.f32 %v308, %v324
    %v333 = vsub.f32 %v313, %v327
    %v334 = vsub.f32 %v316, %v330
    %v335 = vmul.f32 %v331, 1.442695
    %v336 = vpow.pop %v335
    %v337 = vmul.f32 %v332, 1.442695
    %v338 = vpow.pop %v337
    %v339 = vmul.f32 %v333, 1.442695
    %v340 = vpow.pop %v339
    %v341 = vmul.f32 %v334, 1.442695
    %v342 = vpow.pop %v341
    %v343 = vsel %vm149, %v336, 0.0
    %344 = vadd.xlane.f32.xlu0 %v343
    %v345 = vpop.xlane.xlu0 %344
    %v346 = vsel %vm149, %v338, 0.0
    %347 = vadd.xlane.f32.xlu0 %v346
    %v348 = vpop.xlane.xlu0 %347
    %v349 = vsel %vm149, %v340, 0.0
    %350 = vadd.xlane.f32.xlu0 %v349
    %v351 = vpop.xlane.xlu0 %350
    %v352 = vsel %vm149, %v342, 0.0
    %353 = vadd.xlane.f32.xlu0 %v352
    %v354 = vpop.xlane.xlu0 %353
    %v355 = vrcp.pop %v345
    %v356 = vrcp.pop %v348
    %v357 = vrcp.pop %v351
    %v358 = vrcp.pop %v354
    %v359 = vmul.f32 %v336, %v355
    %v360 = vmul.f32 %v338, %v356
    %v361 = vmul.f32 %v340, %v357
    %v362 = vmul.f32 %v342, %v358
    %v363 = vpack.c.bf16 %v360, %v359
    %v364 = vpack.c.bf16 %v362, %v361
    %365 = vrot.lane.b32.xlu0 %v85, 64
    %v366 = vpop.permute.xlu0 %365
    %v369 = vsel %vm149, %v363, 0
    %v372 = vsel %vm149, %v364, 0
    %374 = vmatprep.subr.bf16.mxu0 0
    %375 = vmatpush1.bf16.msra.mxu0 %v366
    %376 = vmatprep.subr.bf16.mxu0 0
    %377 = vmatpush1.bf16.msra.mxu0 0
    %378 = vmatprep.subr.bf16.mxu0 0
    %379 = vmatpush1.bf16.msra.mxu0 0
    %380 = vmatprep.subr.bf16.mxu0 0
    %381 = vmatpush1.bf16.msra.mxu0 0
    %382 = vmatprep.subr.bf16.mxu0 0
    %383 = vmatpush1.bf16.msra.mxu0 0
    %384 = vmatprep.subr.bf16.mxu0 0
    %385 = vmatpush1.bf16.msra.mxu0 0
    %386 = vmatprep.subr.bf16.mxu0 0
    %387 = vmatpush1.bf16.msra.mxu0 0
    %388 = vmatprep.subr.bf16.mxu0 0
    %389 = vmatpush1.bf16.msra.mxu0 0
    %390 = vmatprep.subr.bf16.mxu0 0
    %391 = vmatpush1.bf16.msra.mxu0 0
    %392 = vmatprep.subr.bf16.mxu0 0
    %393 = vmatpush1.bf16.msra.mxu0 0
    %394 = vmatprep.subr.bf16.mxu0 0
    %395 = vmatpush1.bf16.msra.mxu0 0
    %396 = vmatprep.subr.bf16.mxu0 0
    %397 = vmatpush1.bf16.msra.mxu0 0
    %398 = vmatprep.subr.bf16.mxu0 0
    %399 = vmatpush1.bf16.msra.mxu0 0
    %400 = vmatprep.subr.bf16.mxu0 0
    %401 = vmatpush1.bf16.msra.mxu0 0
    %402 = vmatprep.subr.bf16.mxu0 0
    %403 = vmatpush1.bf16.msra.mxu0 0
    %404 = vmatprep.subr.bf16.mxu0 0
    %405 = vmatpush1.bf16.msra.mxu0 0
    %406 = vmatprep.mubr.bf16.mxu0 0
    %407 = vmatmul.mubr.bf16.gmra.mrb[0].mxu0 %v369
    %v408 = vpop.f32.mrb[0].mxu0
    %v409 = vadd.f32 0.0, %v408
    %v410 = vpop.f32.mrb[0].mxu0
    %v411 = vpop.f32.mrb[0].mxu0
    %v412 = vadd.f32 0.0, %v411
    %v413 = vpop.f32.mrb[0].mxu0
    %414 = vmatprep.mubr.bf16.mxu0 0
    %415 = vmatmul.mubr.bf16.gmra.mrb[0].mxu0 %v372
    %v416 = vpop.f32.mrb[0].mxu0
    %v417 = vadd.f32 0.0, %v416
    %v418 = vpop.f32.mrb[0].mxu0
    %v419 = vpop.f32.mrb[0].mxu0
    %v420 = vadd.f32 0.0, %v419
    %v421 = vpop.f32.mrb[0].mxu0
    %422 = vdwg.mxu0
    %v423 = vsub.f32 %v240, %v409
    %v424 = vsub.f32 %v243, %v412
    %v425 = vsub.f32 %v248, %v417
    %v426 = vsub.f32 %v251, %v420
    %v427 = vsel %vm149, %v423, 0.0
    %428 = vadd.xlane.f32.xlu0 %v427
    %v429 = vpop.xlane.xlu0 %428
    %v430 = vsel %vm149, %v424, 0.0
    %431 = vadd.xlane.f32.xlu0 %v430
    %v432 = vpop.xlane.xlu0 %431
    %v433 = vsel %vm149, %v425, 0.0
    %434 = vadd.xlane.f32.xlu0 %v433
    %v435 = vpop.xlane.xlu0 %434
    %v436 = vsel %vm149, %v426, 0.0
    %437 = vadd.xlane.f32.xlu0 %v436
    %v438 = vpop.xlane.xlu0 %437
    %v439 = vrcp.pop 16.0
    %v440 = vmul.f32 %v429, %v439
    %v441 = vmul.f32 %v432, %v439
    %v442 = vmul.f32 %v435, %v439
    %v443 = vmul.f32 %v438, %v439
    %v444 = vsub.f32 %v423, %v440
    %v445 = vsub.f32 %v424, %v441
    %v446 = vsub.f32 %v425, %v442
    %v447 = vsub.f32 %v426, %v443
    %v448 = vmul.f32 %v444, %v444
    %v449 = vmul.f32 %v445, %v445
    %v450 = vmul.f32 %v446, %v446
    %v451 = vmul.f32 %v447, %v447
    %v452 = vsel %vm149, %v448, 0.0
    %453 = vadd.xlane.f32.xlu0 %v452
    %v454 = vpop.xlane.xlu0 %453
    %v455 = vsel %vm149, %v449, 0.0
    %456 = vadd.xlane.f32.xlu0 %v455
    %v457 = vpop.xlane.xlu0 %456
    %v458 = vsel %vm149, %v450, 0.0
    %459 = vadd.xlane.f32.xlu0 %v458
    %v460 = vpop.xlane.xlu0 %459
    %v461 = vsel %vm149, %v451, 0.0
    %462 = vadd.xlane.f32.xlu0 %v461
    %v463 = vpop.xlane.xlu0 %462
    %v464 = vmul.f32 %v454, %v439
    %v465 = vmul.f32 %v457, %v439
    %v466 = vmul.f32 %v460, %v439
    %v467 = vmul.f32 %v463, %v439
    %v468 = vadd.f32 %v464, 1e-05
    %v469 = vadd.f32 %v465, 1e-05
    %v470 = vadd.f32 %v466, 1e-05
    %v471 = vadd.f32 %v467, 1e-05
    %v472 = vrsqrt.pop %v468
    %v473 = vrsqrt.pop %v469
    %v474 = vrsqrt.pop %v470
    %v475 = vrsqrt.pop %v471
    %v476 = vmul.f32 %v444, %v472
    %v477 = vmul.f32 %v445, %v473
    %v478 = vmul.f32 %v446, %v474
    %v479 = vmul.f32 %v447, %v475
    %v480 = vpack.c.bf16 %v477, %v476
    %v481 = vpack.c.bf16 %v479, %v478
    %v482 = vld [vmem:[%s2] sm:$0xff]
    %v483 = vld [vmem:[%s2 + $0x8] sm:$0xff]
    %v484 = vld [vmem:[%s2 + $0x10] sm:$0xff]
    %v485 = vld [vmem:[%s2 + $0x18] sm:$0xff]
    %v486 = vld [vmem:[%s2 + $0x20] sm:$0x1]
    %v487 = vpack.c.bf16 %v483, %v482
    %v488 = vpack.c.bf16 %v485, %v484
    %v490 = vsel %vm149, %v481, 0
    %492 = vmatprep.subr.bf16.mxu0 0
    %493 = vmatpush1.bf16.msra.mxu0 %v488
    %494 = vmatprep.subr.bf16.mxu0 0
    %495 = vmatpush1.bf16.msra.mxu0 0
    %496 = vmatprep.subr.bf16.mxu0 0
    %497 = vmatpush1.bf16.msra.mxu0 0
    %498 = vmatprep.subr.bf16.mxu0 0
    %499 = vmatpush1.bf16.msra.mxu0 0
    %500 = vmatprep.subr.bf16.mxu0 0
    %501 = vmatpush1.bf16.msra.mxu0 0
    %502 = vmatprep.subr.bf16.mxu0 0
    %503 = vmatpush1.bf16.msra.mxu0 0
    %504 = vmatprep.subr.bf16.mxu0 0
    %505 = vmatpush1.bf16.msra.mxu0 0
    %506 = vmatprep.subr.bf16.mxu0 0
    %507 = vmatpush1.bf16.msra.mxu0 0
    %508 = vmatprep.subr.bf16.mxu0 0
    %509 = vmatpush1.bf16.msra.mxu0 0
    %510 = vmatprep.subr.bf16.mxu0 0
    %511 = vmatpush1.bf16.msra.mxu0 0
    %512 = vmatprep.subr.bf16.mxu0 0
    %513 = vmatpush1.bf16.msra.mxu0 0
    %514 = vmatprep.subr.bf16.mxu0 0
    %515 = vmatpush1.bf16.msra.mxu0 0
    %516 = vmatprep.subr.bf16.mxu0 0
    %517 = vmatpush1.bf16.msra.mxu0 0
    %518 = vmatprep.subr.bf16.mxu0 0
    %519 = vmatpush1.bf16.msra.mxu0 0
    %520 = vmatprep.subr.bf16.mxu0 0
    %521 = vmatpush1.bf16.msra.mxu0 0
    %522 = vmatprep.subr.bf16.mxu0 0
    %523 = vmatpush1.bf16.msra.mxu0 0
    %524 = vmatprep.mubr.bf16.mxu0 0
    %525 = vmatmul.mubr.bf16.gmra.mrb[0].mxu0 %v490
    %v526 = vpop.f32.mrb[0].mxu0
    %v527 = vadd.f32 0.0, %v526
    %v528 = vpop.f32.mrb[0].mxu0
    %v529 = vpop.f32.mrb[0].mxu0
    %v530 = vadd.f32 0.0, %v529
    %v531 = vpop.f32.mrb[0].mxu0
    %532 = vdwg.mxu0
    %v534 = vsel %vm149, %v480, 0
    %536 = vmatprep.subr.bf16.mxu0 0
    %537 = vmatpush1.bf16.msra.mxu0 %v487
    %538 = vmatprep.subr.bf16.mxu0 0
    %539 = vmatpush1.bf16.msra.mxu0 0
    %540 = vmatprep.subr.bf16.mxu0 0
    %541 = vmatpush1.bf16.msra.mxu0 0
    %542 = vmatprep.subr.bf16.mxu0 0
    %543 = vmatpush1.bf16.msra.mxu0 0
    %544 = vmatprep.subr.bf16.mxu0 0
    %545 = vmatpush1.bf16.msra.mxu0 0
    %546 = vmatprep.subr.bf16.mxu0 0
    %547 = vmatpush1.bf16.msra.mxu0 0
    %548 = vmatprep.subr.bf16.mxu0 0
    %549 = vmatpush1.bf16.msra.mxu0 0
    %550 = vmatprep.subr.bf16.mxu0 0
    %551 = vmatpush1.bf16.msra.mxu0 0
    %552 = vmatprep.subr.bf16.mxu0 0
    %553 = vmatpush1.bf16.msra.mxu0 0
    %554 = vmatprep.subr.bf16.mxu0 0
    %555 = vmatpush1.bf16.msra.mxu0 0
    %556 = vmatprep.subr.bf16.mxu0 0
    %557 = vmatpush1.bf16.msra.mxu0 0
    %558 = vmatprep.subr.bf16.mxu0 0
    %559 = vmatpush1.bf16.msra.mxu0 0
    %560 = vmatprep.subr.bf16.mxu0 0
    %561 = vmatpush1.bf16.msra.mxu0 0
    %562 = vmatprep.subr.bf16.mxu0 0
    %563 = vmatpush1.bf16.msra.mxu0 0
    %564 = vmatprep.subr.bf16.mxu0 0
    %565 = vmatpush1.bf16.msra.mxu0 0
    %566 = vmatprep.subr.bf16.mxu0 0
    %567 = vmatpush1.bf16.msra.mxu0 0
    %568 = vmatprep.mubr.bf16.mxu0 0
    %569 = vmatmul.mubr.bf16.gmra.mrb[0].mxu0 %v534
    %v570 = vpop.f32.mrb[0].mxu0
    %v571 = vadd.f32 %v527, %v570
    %v572 = vpop.f32.mrb[0].mxu0
    %v573 = vpop.f32.mrb[0].mxu0
    %v574 = vadd.f32 %v530, %v573
    %v575 = vpop.f32.mrb[0].mxu0
    %576 = vdwg.mxu0
    %v577 = vlaneseq
    %v578 = vshrl.u32 %v577, 7
    %v579 = vsub.s32 0, %v578
    %v580 = vrot.slane %v486, %v579
    %v581 = vadd.f32 %v571, %v580
    %v582 = vadd.f32 %v574, %v580
    %583 = vst.msk [vmem:[#allocation2] sm:$0xff] %vm28, %v581
    %584 = vst.msk [vmem:[#allocation2 + $0x8] sm:$0xff] %vm28, %v582
    // Predicated region
    $region18: #{diff_attention_forward.1} parent=1 // pred_check
      _
    $region19: #{diff_attention_forward.1} parent=1 // pred_check_branch
      %586 = sbr.rel (0) target = $region21
    $region20: #{diff_attention_forward.1} parent=1 // pred_region
      %s588 = ssub.s32 256, 256
      %589 = vsyncadd [#allocation3], %s588
      %s590 = sshll.u32 [#allocation2], 4
      %s591 = int_to_ptr.vmem [resolvable:$true] %s590
      %596 = dma.vmem_to_hbm [thread:$0]  %s591, 256, %s4, [#allocation3], 128, 128, 8
    $region21: #{diff_attention_forward.1} parent=1 // pred_fallthru
      _
    // Predicated region
    $region22: #{diff_attention_forward.1} parent=1 // pred_check
      _
    $region23: #{diff_attention_forward.1} parent=1 // pred_check_branch
      %598 = sbr.rel (0) target = $region25
    $region24: #{diff_attention_forward.1} parent=1 // pred_region
      %599 = dma.done [#allocation3], 256
    $region25: #{diff_attention_forward.1} parent=1 // pred_fallthru
      _
    %600 = vsyncpa [#allocation3], 1

</llo_original>
